<compile_context>
chip_gen: v7x
topology: tpu7x:2x2x1
jax: 0.10.0
libtpu: 0.0.40
codegen_flags: <defaults>
</compile_context>

<pallas_src>
import jax
import jax.numpy as jnp
from jax import lax
from jax.experimental import pallas as pl
from jax.experimental.pallas import tpu as pltpu


def rnn_kernel(x_ref, w_ih_row_ref, w_hh_t_ref, b_ref, w_out_t_ref, b_out_ref, out_ref):
    """Whole-sequence RNN(tanh) + Linear head forward in one invocation.

    x_ref:        (B, T)    inputs, PyTorch batch_first layout (input_size == 1)
    w_ih_row_ref: (1, H)    W_ih^T  (K=1 row -> VPU broadcast multiply, no MXU)
    w_hh_t_ref:   (H, H)    W_hh^T
    b_ref:        (1, H)    b_ih + b_hh (fused in wrapper)
    w_out_t_ref:  (H, O)    W_out^T
    b_out_ref:    (1, O)    b_out
    out_ref:      (B, T*O)  lane-dense output slab; out_ref[b, t*O + o] = y[b, t, o]
    """
    B, T = x_ref.shape
    H = w_hh_t_ref.shape[0]

    x = x_ref[...]               # (B, T)   loaded once
    w_row = w_ih_row_ref[...]    # (1, H)
    bias = b_ref[...]            # (1, H)   fused RNN bias
    w_hh_t = w_hh_t_ref[...]     # (H, H)   loaded once, reused every step
    w_out_t = w_out_t_ref[...]   # (H, O)
    b_out = b_out_ref[...]       # (1, O)

    h = jnp.zeros((B, H), jnp.float32)
    cols = []
    # T is small and static -> fully unrolled; all slices below are static.
    for t in range(T):
        x_col = x[:, t:t + 1]                                   # (B, 1) static lane slice
        ip = x_col * w_row + bias                               # (B, H) VPU broadcast mul
        if t == 0:
            pre = ip                                            # h_0 == 0: skip the matmul
        else:
            pre = ip + jnp.dot(h, w_hh_t,
                               preferred_element_type=jnp.float32)
        h = jnp.tanh(pre)                                       # (B, H)
        # Linear head per step (not on the recurrence dependency chain).
        cols.append(jnp.dot(h, w_out_t,
                            preferred_element_type=jnp.float32) + b_out)   # (B, O)

    out_ref[...] = jnp.concatenate(cols, axis=1).astype(out_ref.dtype)     # (B, T*O)


def rnn_forward(x, params):
    """x: (B, T) float32 (PyTorch forward unsqueezes last dim -> input_size must be 1).
    Returns (B, T, output_size), same as the torch module's forward."""
    w_ih, w_hh, b_ih, b_hh, w_out, b_out = params   # torch-convention shapes
    B, T = x.shape
    I = w_ih.shape[1]
    H = w_hh.shape[0]
    O = w_out.shape[0]
    assert I == 1, "forward() unsqueezes the last dim, so input_size must be 1"

    # Tiny parameter prep (would be pre-computed once in a real deployment).
    w_ih_row = w_ih.T                   # (1, H)
    w_hh_t = w_hh.T                     # (H, H)
    b_fused = (b_ih + b_hh)[None, :]    # (1, H)
    w_out_t = w_out.T                   # (H, O)
    b_out_row = b_out[None, :]          # (1, O)

    out_flat = pl.pallas_call(
        rnn_kernel,
        out_shape=jax.ShapeDtypeStruct((B, T * O), jnp.float32),
        grid_spec=pltpu.PrefetchScalarGridSpec(
            num_scalar_prefetch=0,
            grid=(1,),                                   # single invocation; VMEM-resident
            in_specs=[
                pl.BlockSpec((B, T), lambda i: (0, 0)),      # x, batch_first layout
                pl.BlockSpec((1, H), lambda i: (0, 0)),      # W_ih^T row
                pl.BlockSpec((H, H), lambda i: (0, 0)),      # W_hh^T
                pl.BlockSpec((1, H), lambda i: (0, 0)),      # fused bias
                pl.BlockSpec((H, O), lambda i: (0, 0)),      # W_out^T
                pl.BlockSpec((1, O), lambda i: (0, 0)),      # b_out
            ],
            out_specs=pl.BlockSpec((B, T * O), lambda i: (0, 0)),   # lane-dense slab
        ),
        compiler_params=pltpu.CompilerParams(
            dimension_semantics=("arbitrary",)),
    )(x, w_ih_row, w_hh_t, b_fused, w_out_t, b_out_row)

    # Row-major (B, T*O) -> (B, T, O) is a free bitcast-style reshape (no transpose).
    return out_flat.reshape(B, T, O)


def rnn_forward_ref(x, params):
    """Pure-JAX reference (lax.scan) replicating nn.RNN(tanh) + Linear."""
    w_ih, w_hh, b_ih, b_hh, w_out, b_out = params
    B, T = x.shape
    H = w_hh.shape[0]
    x_seq = jnp.transpose(x[..., None], (1, 0, 2))  # (T, B, I)

    def step(h, x_t):
        h_new = jnp.tanh(x_t @ w_ih.T + b_ih + h @ w_hh.T + b_hh)
        y = h_new @ w_out.T + b_out
        return h_new, y

    _, ys = lax.scan(step, jnp.zeros((B, H), jnp.float32), x_seq)
    return jnp.transpose(ys, (1, 0, 2))


def init_params(key, input_size, hidden_size, output_size):
    """Deterministic init mimicking PyTorch defaults: U(-1/sqrt(H), 1/sqrt(H))."""
    ks = jax.random.split(key, 6)
    stdv = 1.0 / jnp.sqrt(jnp.float32(hidden_size))
    u = lambda k, shape: jax.random.uniform(k, shape, jnp.float32, -stdv, stdv)
    w_ih = u(ks[0], (hidden_size, input_size))    # rnn.weight_ih_l0
    w_hh = u(ks[1], (hidden_size, hidden_size))   # rnn.weight_hh_l0
    b_ih = u(ks[2], (hidden_size,))               # rnn.bias_ih_l0
    b_hh = u(ks[3], (hidden_size,))               # rnn.bias_hh_l0
    w_out = u(ks[4], (output_size, hidden_size))  # linear_out.weight
    b_out = u(ks[5], (output_size,))              # linear_out.bias
    return (w_ih, w_hh, b_ih, b_hh, w_out, b_out)


if __name__ == "__main__":
    input_size, hidden_size, output_size = 1, 32, 1
    B, T = 8, 8   # batch, sequence length (forward sees x of shape (B, T))

    key = jax.random.PRNGKey(0)
    pkey, xkey = jax.random.split(key)
    params = init_params(pkey, input_size, hidden_size, output_size)
    x = jax.random.normal(xkey, (B, T), jnp.float32)

    out = jax.block_until_ready(rnn_forward(x, params))
    ref = jax.block_until_ready(rnn_forward_ref(x, params))

    assert out.shape == (B, T, output_size), out.shape
    assert jnp.allclose(out, ref, atol=1e-5, rtol=1e-5), float(jnp.max(jnp.abs(out - ref)))
    print("KERNEL_OK")
</pallas_src>

<mosaic_0001>
module attributes {stable_mosaic.version = 11 : i64} {
  func.func @rnn_kernel(%arg0: i32, %arg1: memref<8x8xf32, #tpu.memory_space<vmem>>, %arg2: memref<1x32xf32, #tpu.memory_space<vmem>>, %arg3: memref<32x32xf32, #tpu.memory_space<vmem>>, %arg4: memref<1x32xf32, #tpu.memory_space<vmem>>, %arg5: memref<32x1xf32, #tpu.memory_space<vmem>>, %arg6: memref<1x1xf32, #tpu.memory_space<vmem>>, %arg7: memref<8x8xf32, #tpu.memory_space<vmem>>) attributes {dimension_semantics = [#tpu.dimension_semantics<arbitrary>], iteration_bounds = array<i64: 1>, scalar_prefetch = 0 : i64, scratch_operands = 0 : i64, tpu.core_type = #tpu.core_type<tc>, window_params = [{pipeline_mode = #tpu.pipeline_mode<synchronous>, transform_indices = @transform_0, window_bounds = array<i64: 8, 8>}, {pipeline_mode = #tpu.pipeline_mode<synchronous>, transform_indices = @transform_1, window_bounds = array<i64: 1, 32>}, {pipeline_mode = #tpu.pipeline_mode<synchronous>, transform_indices = @transform_2, window_bounds = array<i64: 32, 32>}, {pipeline_mode = #tpu.pipeline_mode<synchronous>, transform_indices = @transform_3, window_bounds = array<i64: 1, 32>}, {pipeline_mode = #tpu.pipeline_mode<synchronous>, transform_indices = @transform_4, window_bounds = array<i64: 32, 1>}, {pipeline_mode = #tpu.pipeline_mode<synchronous>, transform_indices = @transform_5, window_bounds = array<i64: 1, 1>}, {pipeline_mode = #tpu.pipeline_mode<synchronous>, transform_indices = @transform_6, window_bounds = array<i64: 8, 8>}]} {
    %c0 = arith.constant 0 : index
    %c0_0 = arith.constant 0 : index
    %0 = vector.load %arg1[%c0, %c0_0] : memref<8x8xf32, #tpu.memory_space<vmem>>, vector<8x8xf32>
    %c0_1 = arith.constant 0 : index
    %c0_2 = arith.constant 0 : index
    %1 = vector.load %arg2[%c0_1, %c0_2] : memref<1x32xf32, #tpu.memory_space<vmem>>, vector<1x32xf32>
    %c0_3 = arith.constant 0 : index
    %c0_4 = arith.constant 0 : index
    %2 = vector.load %arg4[%c0_3, %c0_4] : memref<1x32xf32, #tpu.memory_space<vmem>>, vector<1x32xf32>
    %c0_5 = arith.constant 0 : index
    %c0_6 = arith.constant 0 : index
    %3 = vector.load %arg3[%c0_5, %c0_6] : memref<32x32xf32, #tpu.memory_space<vmem>>, vector<32x32xf32>
    %c0_7 = arith.constant 0 : index
    %c0_8 = arith.constant 0 : index
    %4 = vector.load %arg5[%c0_7, %c0_8] : memref<32x1xf32, #tpu.memory_space<vmem>>, vector<32x1xf32>
    %c0_9 = arith.constant 0 : index
    %c0_10 = arith.constant 0 : index
    %5 = vector.load %arg6[%c0_9, %c0_10] : memref<1x1xf32, #tpu.memory_space<vmem>>, vector<1x1xf32>
    %6 = vector.extract_strided_slice %0 {offsets = [0, 0], sizes = [8, 1], strides = [1, 1]} : vector<8x8xf32> to vector<8x1xf32>
    %7 = vector.broadcast %6 : vector<8x1xf32> to vector<8x32xf32>
    %8 = vector.broadcast %1 : vector<1x32xf32> to vector<8x32xf32>
    %9 = arith.mulf %7, %8 : vector<8x32xf32>
    %10 = vector.broadcast %2 : vector<1x32xf32> to vector<8x32xf32>
    %11 = arith.addf %9, %10 : vector<8x32xf32>
    %12 = math.tanh %11 : vector<8x32xf32>
    %cst = arith.constant dense<0.000000e+00> : vector<8x1xf32>
    %13 = tpu.matmul %12, %4, %cst {dimension_numbers = #tpu.dot_dimension_numbers<[1], [0], [0], [1], [0, 0, 1, 1], [], []>} : vector<8x32xf32>, vector<32x1xf32>, vector<8x1xf32> -> vector<8x1xf32>
    %14 = vector.broadcast %5 : vector<1x1xf32> to vector<8x1xf32>
    %15 = arith.addf %13, %14 : vector<8x1xf32>
    %16 = vector.extract_strided_slice %0 {offsets = [0, 1], sizes = [8, 1], strides = [1, 1]} : vector<8x8xf32> to vector<8x1xf32>
    %17 = vector.broadcast %16 : vector<8x1xf32> to vector<8x32xf32>
    %18 = vector.broadcast %1 : vector<1x32xf32> to vector<8x32xf32>
    %19 = arith.mulf %17, %18 : vector<8x32xf32>
    %20 = vector.broadcast %2 : vector<1x32xf32> to vector<8x32xf32>
    %21 = arith.addf %19, %20 : vector<8x32xf32>
    %cst_11 = arith.constant dense<0.000000e+00> : vector<8x32xf32>
    %22 = tpu.matmul %12, %3, %cst_11 {dimension_numbers = #tpu.dot_dimension_numbers<[1], [0], [0], [1], [0, 0, 1, 1], [], []>} : vector<8x32xf32>, vector<32x32xf32>, vector<8x32xf32> -> vector<8x32xf32>
    %23 = arith.addf %21, %22 : vector<8x32xf32>
    %24 = math.tanh %23 : vector<8x32xf32>
    %cst_12 = arith.constant dense<0.000000e+00> : vector<8x1xf32>
    %25 = tpu.matmul %24, %4, %cst_12 {dimension_numbers = #tpu.dot_dimension_numbers<[1], [0], [0], [1], [0, 0, 1, 1], [], []>} : vector<8x32xf32>, vector<32x1xf32>, vector<8x1xf32> -> vector<8x1xf32>
    %26 = vector.broadcast %5 : vector<1x1xf32> to vector<8x1xf32>
    %27 = arith.addf %25, %26 : vector<8x1xf32>
    %28 = vector.extract_strided_slice %0 {offsets = [0, 2], sizes = [8, 1], strides = [1, 1]} : vector<8x8xf32> to vector<8x1xf32>
    %29 = vector.broadcast %28 : vector<8x1xf32> to vector<8x32xf32>
    %30 = vector.broadcast %1 : vector<1x32xf32> to vector<8x32xf32>
    %31 = arith.mulf %29, %30 : vector<8x32xf32>
    %32 = vector.broadcast %2 : vector<1x32xf32> to vector<8x32xf32>
    %33 = arith.addf %31, %32 : vector<8x32xf32>
    %cst_13 = arith.constant dense<0.000000e+00> : vector<8x32xf32>
    %34 = tpu.matmul %24, %3, %cst_13 {dimension_numbers = #tpu.dot_dimension_numbers<[1], [0], [0], [1], [0, 0, 1, 1], [], []>} : vector<8x32xf32>, vector<32x32xf32>, vector<8x32xf32> -> vector<8x32xf32>
    %35 = arith.addf %33, %34 : vector<8x32xf32>
    %36 = math.tanh %35 : vector<8x32xf32>
    %cst_14 = arith.constant dense<0.000000e+00> : vector<8x1xf32>
    %37 = tpu.matmul %36, %4, %cst_14 {dimension_numbers = #tpu.dot_dimension_numbers<[1], [0], [0], [1], [0, 0, 1, 1], [], []>} : vector<8x32xf32>, vector<32x1xf32>, vector<8x1xf32> -> vector<8x1xf32>
    %38 = vector.broadcast %5 : vector<1x1xf32> to vector<8x1xf32>
    %39 = arith.addf %37, %38 : vector<8x1xf32>
    %40 = vector.extract_strided_slice %0 {offsets = [0, 3], sizes = [8, 1], strides = [1, 1]} : vector<8x8xf32> to vector<8x1xf32>
    %41 = vector.broadcast %40 : vector<8x1xf32> to vector<8x32xf32>
    %42 = vector.broadcast %1 : vector<1x32xf32> to vector<8x32xf32>
    %43 = arith.mulf %41, %42 : vector<8x32xf32>
    %44 = vector.broadcast %2 : vector<1x32xf32> to vector<8x32xf32>
    %45 = arith.addf %43, %44 : vector<8x32xf32>
    %cst_15 = arith.constant dense<0.000000e+00> : vector<8x32xf32>
    %46 = tpu.matmul %36, %3, %cst_15 {dimension_numbers = #tpu.dot_dimension_numbers<[1], [0], [0], [1], [0, 0, 1, 1], [], []>} : vector<8x32xf32>, vector<32x32xf32>, vector<8x32xf32> -> vector<8x32xf32>
    %47 = arith.addf %45, %46 : vector<8x32xf32>
    %48 = math.tanh %47 : vector<8x32xf32>
    %cst_16 = arith.constant dense<0.000000e+00> : vector<8x1xf32>
    %49 = tpu.matmul %48, %4, %cst_16 {dimension_numbers = #tpu.dot_dimension_numbers<[1], [0], [0], [1], [0, 0, 1, 1], [], []>} : vector<8x32xf32>, vector<32x1xf32>, vector<8x1xf32> -> vector<8x1xf32>
    %50 = vector.broadcast %5 : vector<1x1xf32> to vector<8x1xf32>
    %51 = arith.addf %49, %50 : vector<8x1xf32>
    %52 = vector.extract_strided_slice %0 {offsets = [0, 4], sizes = [8, 1], strides = [1, 1]} : vector<8x8xf32> to vector<8x1xf32>
    %53 = vector.broadcast %52 : vector<8x1xf32> to vector<8x32xf32>
    %54 = vector.broadcast %1 : vector<1x32xf32> to vector<8x32xf32>
    %55 = arith.mulf %53, %54 : vector<8x32xf32>
    %56 = vector.broadcast %2 : vector<1x32xf32> to vector<8x32xf32>
    %57 = arith.addf %55, %56 : vector<8x32xf32>
    %cst_17 = arith.constant dense<0.000000e+00> : vector<8x32xf32>
    %58 = tpu.matmul %48, %3, %cst_17 {dimension_numbers = #tpu.dot_dimension_numbers<[1], [0], [0], [1], [0, 0, 1, 1], [], []>} : vector<8x32xf32>, vector<32x32xf32>, vector<8x32xf32> -> vector<8x32xf32>
    %59 = arith.addf %57, %58 : vector<8x32xf32>
    %60 = math.tanh %59 : vector<8x32xf32>
    %cst_18 = arith.constant dense<0.000000e+00> : vector<8x1xf32>
    %61 = tpu.matmul %60, %4, %cst_18 {dimension_numbers = #tpu.dot_dimension_numbers<[1], [0], [0], [1], [0, 0, 1, 1], [], []>} : vector<8x32xf32>, vector<32x1xf32>, vector<8x1xf32> -> vector<8x1xf32>
    %62 = vector.broadcast %5 : vector<1x1xf32> to vector<8x1xf32>
    %63 = arith.addf %61, %62 : vector<8x1xf32>
    %64 = vector.extract_strided_slice %0 {offsets = [0, 5], sizes = [8, 1], strides = [1, 1]} : vector<8x8xf32> to vector<8x1xf32>
    %65 = vector.broadcast %64 : vector<8x1xf32> to vector<8x32xf32>
    %66 = vector.broadcast %1 : vector<1x32xf32> to vector<8x32xf32>
    %67 = arith.mulf %65, %66 : vector<8x32xf32>
    %68 = vector.broadcast %2 : vector<1x32xf32> to vector<8x32xf32>
    %69 = arith.addf %67, %68 : vector<8x32xf32>
    %cst_19 = arith.constant dense<0.000000e+00> : vector<8x32xf32>
    %70 = tpu.matmul %60, %3, %cst_19 {dimension_numbers = #tpu.dot_dimension_numbers<[1], [0], [0], [1], [0, 0, 1, 1], [], []>} : vector<8x32xf32>, vector<32x32xf32>, vector<8x32xf32> -> vector<8x32xf32>
    %71 = arith.addf %69, %70 : vector<8x32xf32>
    %72 = math.tanh %71 : vector<8x32xf32>
    %cst_20 = arith.constant dense<0.000000e+00> : vector<8x1xf32>
    %73 = tpu.matmul %72, %4, %cst_20 {dimension_numbers = #tpu.dot_dimension_numbers<[1], [0], [0], [1], [0, 0, 1, 1], [], []>} : vector<8x32xf32>, vector<32x1xf32>, vector<8x1xf32> -> vector<8x1xf32>
    %74 = vector.broadcast %5 : vector<1x1xf32> to vector<8x1xf32>
    %75 = arith.addf %73, %74 : vector<8x1xf32>
    %76 = vector.extract_strided_slice %0 {offsets = [0, 6], sizes = [8, 1], strides = [1, 1]} : vector<8x8xf32> to vector<8x1xf32>
    %77 = vector.broadcast %76 : vector<8x1xf32> to vector<8x32xf32>
    %78 = vector.broadcast %1 : vector<1x32xf32> to vector<8x32xf32>
    %79 = arith.mulf %77, %78 : vector<8x32xf32>
    %80 = vector.broadcast %2 : vector<1x32xf32> to vector<8x32xf32>
    %81 = arith.addf %79, %80 : vector<8x32xf32>
    %cst_21 = arith.constant dense<0.000000e+00> : vector<8x32xf32>
    %82 = tpu.matmul %72, %3, %cst_21 {dimension_numbers = #tpu.dot_dimension_numbers<[1], [0], [0], [1], [0, 0, 1, 1], [], []>} : vector<8x32xf32>, vector<32x32xf32>, vector<8x32xf32> -> vector<8x32xf32>
    %83 = arith.addf %81, %82 : vector<8x32xf32>
    %84 = math.tanh %83 : vector<8x32xf32>
    %cst_22 = arith.constant dense<0.000000e+00> : vector<8x1xf32>
    %85 = tpu.matmul %84, %4, %cst_22 {dimension_numbers = #tpu.dot_dimension_numbers<[1], [0], [0], [1], [0, 0, 1, 1], [], []>} : vector<8x32xf32>, vector<32x1xf32>, vector<8x1xf32> -> vector<8x1xf32>
    %86 = vector.broadcast %5 : vector<1x1xf32> to vector<8x1xf32>
    %87 = arith.addf %85, %86 : vector<8x1xf32>
    %88 = vector.extract_strided_slice %0 {offsets = [0, 7], sizes = [8, 1], strides = [1, 1]} : vector<8x8xf32> to vector<8x1xf32>
    %89 = vector.broadcast %88 : vector<8x1xf32> to vector<8x32xf32>
    %90 = vector.broadcast %1 : vector<1x32xf32> to vector<8x32xf32>
    %91 = arith.mulf %89, %90 : vector<8x32xf32>
    %92 = vector.broadcast %2 : vector<1x32xf32> to vector<8x32xf32>
    %93 = arith.addf %91, %92 : vector<8x32xf32>
    %cst_23 = arith.constant dense<0.000000e+00> : vector<8x32xf32>
    %94 = tpu.matmul %84, %3, %cst_23 {dimension_numbers = #tpu.dot_dimension_numbers<[1], [0], [0], [1], [0, 0, 1, 1], [], []>} : vector<8x32xf32>, vector<32x32xf32>, vector<8x32xf32> -> vector<8x32xf32>
    %95 = arith.addf %93, %94 : vector<8x32xf32>
    %96 = math.tanh %95 : vector<8x32xf32>
    %cst_24 = arith.constant dense<0.000000e+00> : vector<8x1xf32>
    %97 = tpu.matmul %96, %4, %cst_24 {dimension_numbers = #tpu.dot_dimension_numbers<[1], [0], [0], [1], [0, 0, 1, 1], [], []>} : vector<8x32xf32>, vector<32x1xf32>, vector<8x1xf32> -> vector<8x1xf32>
    %98 = vector.broadcast %5 : vector<1x1xf32> to vector<8x1xf32>
    %99 = arith.addf %97, %98 : vector<8x1xf32>
    %100 = tpu.concatenate %15, %27, %39, %51, %63, %75, %87, %99 in 1 : vector<8x1xf32>, vector<8x1xf32>, vector<8x1xf32>, vector<8x1xf32>, vector<8x1xf32>, vector<8x1xf32>, vector<8x1xf32>, vector<8x1xf32> -> vector<8x8xf32>
    %c0_25 = arith.constant 0 : index
    %c0_26 = arith.constant 0 : index
    %101 = vector.load %arg7[%c0_25, %c0_26] : memref<8x8xf32, #tpu.memory_space<vmem>>, vector<8x8xf32>
    tpu.vector_store %arg7[%c0_25, %c0_26], %100 {strides = array<i32>} : memref<8x8xf32, #tpu.memory_space<vmem>>, vector<8x8xf32>,
    return
  }
  func.func @transform_0(%arg0: i32) -> (i32, i32) {
    %c0_i32 = arith.constant 0 : i32
    %c0_i32_0 = arith.constant 0 : i32
    %c0_i32_1 = arith.constant 0 : i32
    return %c0_i32, %c0_i32_0 : i32, i32
  }
  func.func @transform_1(%arg0: i32) -> (i32, i32) {
    %c0_i32 = arith.constant 0 : i32
    %c0_i32_0 = arith.constant 0 : i32
    %c0_i32_1 = arith.constant 0 : i32
    return %c0_i32, %c0_i32_0 : i32, i32
  }
  func.func @transform_2(%arg0: i32) -> (i32, i32) {
    %c0_i32 = arith.constant 0 : i32
    %c0_i32_0 = arith.constant 0 : i32
    %c0_i32_1 = arith.constant 0 : i32
    return %c0_i32, %c0_i32_0 : i32, i32
  }
  func.func @transform_3(%arg0: i32) -> (i32, i32) {
    %c0_i32 = arith.constant 0 : i32
    %c0_i32_0 = arith.constant 0 : i32
    %c0_i32_1 = arith.constant 0 : i32
    return %c0_i32, %c0_i32_0 : i32, i32
  }
  func.func @transform_4(%arg0: i32) -> (i32, i32) {
    %c0_i32 = arith.constant 0 : i32
    %c0_i32_0 = arith.constant 0 : i32
    %c0_i32_1 = arith.constant 0 : i32
    return %c0_i32, %c0_i32_0 : i32, i32
  }
  func.func @transform_5(%arg0: i32) -> (i32, i32) {
    %c0_i32 = arith.constant 0 : i32
    %c0_i32_0 = arith.constant 0 : i32
    %c0_i32_1 = arith.constant 0 : i32
    return %c0_i32, %c0_i32_0 : i32, i32
  }
  func.func @transform_6(%arg0: i32) -> (i32, i32) {
    %c0_i32 = arith.constant 0 : i32
    %c0_i32_0 = arith.constant 0 : i32
    %c0_i32_1 = arith.constant 0 : i32
    return %c0_i32, %c0_i32_0 : i32, i32
  }
}

</mosaic_0001>

<llo_original>
// kernel: tpu_custom_call.1
$region0: #{tpu_custom_call.1}
  #allocation0 [shape = 'u32[]', space=smem, size = 0x4, offset = 0x4, fixed_abs, tag = 'smem constant byte address 0x4 - core index']
  #allocation1 [shape = 'u32[144,128]{1,0:T(1,128)}', space=vmem, size = 0x12000, scoped, tag = 'internal scratch']
  #allocation2 [shape = 'f32[1,1]{1,0:T(1,128)S(1)}', space=vmem, size = 0x200, scoped, tag = 'scoped memory for tpu_custom_call.1']
  %s0 = inlined_call_operand.vmem [shape: f32[8,8], index: 0, kind: input, shape index: {}]
  %s1 = inlined_call_operand.vmem [shape: f32[1,32], index: 1, kind: input, shape index: {}]
  %s2 = inlined_call_operand.vmem [shape: f32[32,32], index: 2, kind: input, shape index: {}]
  %s3 = inlined_call_operand.vmem [shape: f32[1,32], index: 3, kind: input, shape index: {}]
  %s4 = inlined_call_operand.vmem [shape: f32[32,1], index: 4, kind: input, shape index: {}]
  %s5 = inlined_call_operand.<no memory space> [shape: f32[1,1], index: 5, kind: input, shape index: {}]
  %s6 = inlined_call_operand.hbm [shape: f32[8,8], index: 6, kind: output, shape index: {}]
  %s7 = sld [smem:[#allocation0]]
  $region34: #{tpu_custom_call.1} parent=0
    _
  %s9 = ssub.s32 1, %s7
  %s10 = scalar_select 0, %s9, %s7
  %v11 = vstv %s5
  %12 = vst [vmem:[#allocation2] sm:$0x1] %v11
  $region1: #{tpu_custom_call.1} parent=0
    #allocation3 [shape = 'u8[4096]{0}', space=vmem, size = 0x1000, scoped, tag = 'output window, operand 0, single buffered']
    #allocation4 [shape = 's32[1]{0}', space=sflag, size = 0x4, scoped, tag = 'scoped memory for tpu_custom_call.1']
    %13 = vsyncpa [#allocation4], 0
    // Predicated region
    $region2: #{tpu_custom_call.1} parent=1 // pred_check
      _
    $region3: #{tpu_custom_call.1} parent=1 // pred_check_branch
      %15 = sbr.rel (0) target = $region5
    $region4: #{tpu_custom_call.1} parent=1 // pred_region
      _
    $region5: #{tpu_custom_call.1} parent=1 // pred_fallthru
      _
    // Predicated region
    $region6: #{tpu_custom_call.1} parent=1 // pred_check
      _
    $region7: #{tpu_custom_call.1} parent=1 // pred_check_branch
      %17 = sbr.rel (0) target = $region9
    $region8: #{tpu_custom_call.1} parent=1 // pred_region
      _
    $region9: #{tpu_custom_call.1} parent=1 // pred_fallthru
      _
    // Predicated region
    $region10: #{tpu_custom_call.1} parent=1 // pred_check
      _
    $region11: #{tpu_custom_call.1} parent=1 // pred_check_branch
      %19 = sbr.rel (0) target = $region13
    $region12: #{tpu_custom_call.1} parent=1 // pred_region
      _
    $region13: #{tpu_custom_call.1} parent=1 // pred_fallthru
      _
    // Predicated region
    $region14: #{tpu_custom_call.1} parent=1 // pred_check
      _
    $region15: #{tpu_custom_call.1} parent=1 // pred_check_branch
      %21 = sbr.rel (0) target = $region17
    $region16: #{tpu_custom_call.1} parent=1 // pred_region
      _
    $region17: #{tpu_custom_call.1} parent=1 // pred_fallthru
      _
    // Predicated region
    $region18: #{tpu_custom_call.1} parent=1 // pred_check
      _
    $region19: #{tpu_custom_call.1} parent=1 // pred_check_branch
      %23 = sbr.rel (0) target = $region21
    $region20: #{tpu_custom_call.1} parent=1 // pred_region
      _
    $region21: #{tpu_custom_call.1} parent=1 // pred_fallthru
      _
    // Predicated region
    $region22: #{tpu_custom_call.1} parent=1 // pred_check
      _
    $region23: #{tpu_custom_call.1} parent=1 // pred_check_branch
      %25 = sbr.rel (0) target = $region25
    $region24: #{tpu_custom_call.1} parent=1 // pred_region
      _
    $region25: #{tpu_custom_call.1} parent=1 // pred_fallthru
      _
    %v26 = vld [vmem:[%s0] sm:$0xff]
    %v27 = vld [vmem:[%s1] sm:$0x1]
    %v28 = vld [vmem:[%s3] sm:$0x1]
    %v29 = vld [vmem:[%s2] sm:$0xff]
    %v30 = vld [vmem:[%s2 + $0x8] sm:$0xff]
    %v31 = vld [vmem:[%s2 + $0x10] sm:$0xff]
    %v32 = vld [vmem:[%s2 + $0x18] sm:$0xff]
    %v33 = vld [vmem:[%s4] sm:$0xff]
    %v34 = vld [vmem:[%s4 + $0x8] sm:$0xff]
    %v35 = vld [vmem:[%s4 + $0x10] sm:$0xff]
    %v36 = vld [vmem:[%s4 + $0x18] sm:$0xff]
    %v37 = vld [vmem:[#allocation2] sm:$0x1]
    %39 = vset.pattern.permute.xlu0 0
    %40 = vperm.xlu0 %39, %v26
    %v41 = vpop.permute.xlu0 %40
    %v44 = vlaneseq
    %v45 = vshrl.u32 %v44, 7
    %v46 = vsub.s32 0, %v45
    %v47 = vrot.slane %v27, %v46
    %v49 = vmul.f32 %v41, %v47
    %v51 = vlaneseq
    %v52 = vshrl.u32 %v51, 7
    %v53 = vsub.s32 0, %v52
    %v54 = vrot.slane %v28, %v53
    %v56 = vadd.f32 %v49, %v54
    %v57 = vtanh.pop %v56
    %v59 = vlaneseq
    %v60 = vshrl.u32 %v59, 7
    %v61 = vsub.s32 0, %v60
    %v62 = vrot.slane %v37, %v61
    %vm64 = vcmask 261120
    %v66 = vsel %vm64, %v57, 0
    %68 = vmatprep.subr.mxu0 0.0
    %69 = vmatpush1.msra.mxu0 %v33
    %70 = vmatprep.subr.mxu0 0.0
    %71 = vmatpush1.msra.mxu0 %v34
    %72 = vmatprep.subr.mxu0 0.0
    %73 = vmatpush1.msra.mxu0 %v35
    %74 = vmatprep.subr.mxu0 0.0
    %75 = vmatpush1.msra.mxu0 %v36
    %76 = vmatprep.subr.mxu0 0.0
    %77 = vmatpush1.msra.mxu0 0.0
    %78 = vmatprep.subr.mxu0 0.0
    %79 = vmatpush1.msra.mxu0 0.0
    %80 = vmatprep.subr.mxu0 0.0
    %81 = vmatpush1.msra.mxu0 0.0
    %82 = vmatprep.subr.mxu0 0.0
    %83 = vmatpush1.msra.mxu0 0.0
    %84 = vmatprep.subr.mxu0 0.0
    %85 = vmatpush1.msra.mxu0 0.0
    %86 = vmatprep.subr.mxu0 0.0
    %87 = vmatpush1.msra.mxu0 0.0
    %88 = vmatprep.subr.mxu0 0.0
    %89 = vmatpush1.msra.mxu0 0.0
    %90 = vmatprep.subr.mxu0 0.0
    %91 = vmatpush1.msra.mxu0 0.0
    %92 = vmatprep.subr.mxu0 0.0
    %93 = vmatpush1.msra.mxu0 0.0
    %94 = vmatprep.subr.mxu0 0.0
    %95 = vmatpush1.msra.mxu0 0.0
    %96 = vmatprep.subr.mxu0 0.0
    %97 = vmatpush1.msra.mxu0 0.0
    %98 = vmatprep.subr.mxu0 0.0
    %99 = vmatpush1.msra.mxu0 0.0
    %100 = vmatprep.subr.mxu0 0.0
    %101 = vmatpush1.msra.mxu0 0.0
    %102 = vmatprep.subr.mxu0 0.0
    %103 = vmatpush1.msra.mxu0 0.0
    %104 = vmatprep.subr.mxu0 0.0
    %105 = vmatpush1.msra.mxu0 0.0
    %106 = vmatprep.subr.mxu0 0.0
    %107 = vmatpush1.msra.mxu0 0.0
    %108 = vmatprep.subr.mxu0 0.0
    %109 = vmatpush1.msra.mxu0 0.0
    %110 = vmatprep.subr.mxu0 0.0
    %111 = vmatpush1.msra.mxu0 0.0
    %112 = vmatprep.subr.mxu0 0.0
    %113 = vmatpush1.msra.mxu0 0.0
    %114 = vmatprep.subr.mxu0 0.0
    %115 = vmatpush1.msra.mxu0 0.0
    %116 = vmatprep.subr.mxu0 0.0
    %117 = vmatpush1.msra.mxu0 0.0
    %118 = vmatprep.subr.mxu0 0.0
    %119 = vmatpush1.msra.mxu0 0.0
    %120 = vmatprep.subr.mxu0 0.0
    %121 = vmatpush1.msra.mxu0 0.0
    %122 = vmatprep.subr.mxu0 0.0
    %123 = vmatpush1.msra.mxu0 0.0
    %124 = vmatprep.subr.mxu0 0.0
    %125 = vmatpush1.msra.mxu0 0.0
    %126 = vmatprep.subr.mxu0 0.0
    %127 = vmatpush1.msra.mxu0 0.0
    %128 = vmatprep.subr.mxu0 0.0
    %129 = vmatpush1.msra.mxu0 0.0
    %130 = vmatprep.subr.mxu0 0.0
    %131 = vmatpush1.msra.mxu0 0.0
    %132 = vmatprep.mubr.f32.mxu0 0.0
    %133 = vmatmul.mubr.f32.gmra.mrb[0].mxu0 %v66
    %v134 = vpop.f32.mrb[0].mxu0
    %v135 = vadd.f32 %v62, %v134
    %v136 = vpop.f32.mrb[0].mxu0
    %137 = vdwg.mxu0
    %138 = vset.pattern.permute.xlu0 1
    %139 = vperm.xlu0 %138, %v26
    %v140 = vpop.permute.xlu0 %139
    %v142 = vmul.f32 %v140, %v47
    %v143 = vadd.f32 %v142, %v54
    %144 = vmatprep.subr.mxu0 0.0
    %145 = vmatpush1.msra.mxu0 %v29
    %146 = vmatprep.subr.mxu0 0.0
    %147 = vmatpush1.msra.mxu0 %v30
    %148 = vmatprep.subr.mxu0 0.0
    %149 = vmatpush1.msra.mxu0 %v31
    %150 = vmatprep.subr.mxu0 0.0
    %151 = vmatpush1.msra.mxu0 %v32
    %152 = vmatprep.subr.mxu0 0.0
    %153 = vmatpush1.msra.mxu0 0.0
    %154 = vmatprep.subr.mxu0 0.0
    %155 = vmatpush1.msra.mxu0 0.0
    %156 = vmatprep.subr.mxu0 0.0
    %157 = vmatpush1.msra.mxu0 0.0
    %158 = vmatprep.subr.mxu0 0.0
    %159 = vmatpush1.msra.mxu0 0.0
    %160 = vmatprep.subr.mxu0 0.0
    %161 = vmatpush1.msra.mxu0 0.0
    %162 = vmatprep.subr.mxu0 0.0
    %163 = vmatpush1.msra.mxu0 0.0
    %164 = vmatprep.subr.mxu0 0.0
    %165 = vmatpush1.msra.mxu0 0.0
    %166 = vmatprep.subr.mxu0 0.0
    %167 = vmatpush1.msra.mxu0 0.0
    %168 = vmatprep.subr.mxu0 0.0
    %169 = vmatpush1.msra.mxu0 0.0
    %170 = vmatprep.subr.mxu0 0.0
    %171 = vmatpush1.msra.mxu0 0.0
    %172 = vmatprep.subr.mxu0 0.0
    %173 = vmatpush1.msra.mxu0 0.0
    %174 = vmatprep.subr.mxu0 0.0
    %175 = vmatpush1.msra.mxu0 0.0
    %176 = vmatprep.subr.mxu0 0.0
    %177 = vmatpush1.msra.mxu0 0.0
    %178 = vmatprep.subr.mxu0 0.0
    %179 = vmatpush1.msra.mxu0 0.0
    %180 = vmatprep.subr.mxu0 0.0
    %181 = vmatpush1.msra.mxu0 0.0
    %182 = vmatprep.subr.mxu0 0.0
    %183 = vmatpush1.msra.mxu0 0.0
    %184 = vmatprep.subr.mxu0 0.0
    %185 = vmatpush1.msra.mxu0 0.0
    %186 = vmatprep.subr.mxu0 0.0
    %187 = vmatpush1.msra.mxu0 0.0
    %188 = vmatprep.subr.mxu0 0.0
    %189 = vmatpush1.msra.mxu0 0.0
    %190 = vmatprep.subr.mxu0 0.0
    %191 = vmatpush1.msra.mxu0 0.0
    %192 = vmatprep.subr.mxu0 0.0
    %193 = vmatpush1.msra.mxu0 0.0
    %194 = vmatprep.subr.mxu0 0.0
    %195 = vmatpush1.msra.mxu0 0.0
    %196 = vmatprep.subr.mxu0 0.0
    %197 = vmatpush1.msra.mxu0 0.0
    %198 = vmatprep.subr.mxu0 0.0
    %199 = vmatpush1.msra.mxu0 0.0
    %200 = vmatprep.subr.mxu0 0.0
    %201 = vmatpush1.msra.mxu0 0.0
    %202 = vmatprep.subr.mxu0 0.0
    %203 = vmatpush1.msra.mxu0 0.0
    %204 = vmatprep.subr.mxu0 0.0
    %205 = vmatpush1.msra.mxu0 0.0
    %206 = vmatprep.subr.mxu0 0.0
    %207 = vmatpush1.msra.mxu0 0.0
    %208 = vmatprep.mubr.f32.mxu0 0.0
    %209 = vmatmul.mubr.f32.gmra.mrb[0].mxu0 %v66
    %v210 = vpop.f32.mrb[0].mxu0
    %v211 = vadd.f32 0.0, %v210
    %v212 = vpop.f32.mrb[0].mxu0
    %213 = vdwg.mxu0
    %v214 = vadd.f32 %v143, %v211
    %v215 = vtanh.pop %v214
    %v217 = vsel %vm64, %v215, 0
    %219 = vmatprep.subr.mxu0 0.0
    %220 = vmatpush1.msra.mxu0 %v33
    %221 = vmatprep.subr.mxu0 0.0
    %222 = vmatpush1.msra.mxu0 %v34
    %223 = vmatprep.subr.mxu0 0.0
    %224 = vmatpush1.msra.mxu0 %v35
    %225 = vmatprep.subr.mxu0 0.0
    %226 = vmatpush1.msra.mxu0 %v36
    %227 = vmatprep.subr.mxu0 0.0
    %228 = vmatpush1.msra.mxu0 0.0
    %229 = vmatprep.subr.mxu0 0.0
    %230 = vmatpush1.msra.mxu0 0.0
    %231 = vmatprep.subr.mxu0 0.0
    %232 = vmatpush1.msra.mxu0 0.0
    %233 = vmatprep.subr.mxu0 0.0
    %234 = vmatpush1.msra.mxu0 0.0
    %235 = vmatprep.subr.mxu0 0.0
    %236 = vmatpush1.msra.mxu0 0.0
    %237 = vmatprep.subr.mxu0 0.0
    %238 = vmatpush1.msra.mxu0 0.0
    %239 = vmatprep.subr.mxu0 0.0
    %240 = vmatpush1.msra.mxu0 0.0
    %241 = vmatprep.subr.mxu0 0.0
    %242 = vmatpush1.msra.mxu0 0.0
    %243 = vmatprep.subr.mxu0 0.0
    %244 = vmatpush1.msra.mxu0 0.0
    %245 = vmatprep.subr.mxu0 0.0
    %246 = vmatpush1.msra.mxu0 0.0
    %247 = vmatprep.subr.mxu0 0.0
    %248 = vmatpush1.msra.mxu0 0.0
    %249 = vmatprep.subr.mxu0 0.0
    %250 = vmatpush1.msra.mxu0 0.0
    %251 = vmatprep.subr.mxu0 0.0
    %252 = vmatpush1.msra.mxu0 0.0
    %253 = vmatprep.subr.mxu0 0.0
    %254 = vmatpush1.msra.mxu0 0.0
    %255 = vmatprep.subr.mxu0 0.0
    %256 = vmatpush1.msra.mxu0 0.0
    %257 = vmatprep.subr.mxu0 0.0
    %258 = vmatpush1.msra.mxu0 0.0
    %259 = vmatprep.subr.mxu0 0.0
    %260 = vmatpush1.msra.mxu0 0.0
    %261 = vmatprep.subr.mxu0 0.0
    %262 = vmatpush1.msra.mxu0 0.0
    %263 = vmatprep.subr.mxu0 0.0
    %264 = vmatpush1.msra.mxu0 0.0
    %265 = vmatprep.subr.mxu0 0.0
    %266 = vmatpush1.msra.mxu0 0.0
    %267 = vmatprep.subr.mxu0 0.0
    %268 = vmatpush1.msra.mxu0 0.0
    %269 = vmatprep.subr.mxu0 0.0
    %270 = vmatpush1.msra.mxu0 0.0
    %271 = vmatprep.subr.mxu0 0.0
    %272 = vmatpush1.msra.mxu0 0.0
    %273 = vmatprep.subr.mxu0 0.0
    %274 = vmatpush1.msra.mxu0 0.0
    %275 = vmatprep.subr.mxu0 0.0
    %276 = vmatpush1.msra.mxu0 0.0
    %277 = vmatprep.subr.mxu0 0.0
    %278 = vmatpush1.msra.mxu0 0.0
    %279 = vmatprep.subr.mxu0 0.0
    %280 = vmatpush1.msra.mxu0 0.0
    %281 = vmatprep.subr.mxu0 0.0
    %282 = vmatpush1.msra.mxu0 0.0
    %283 = vmatprep.mubr.f32.mxu0 0.0
    %284 = vmatmul.mubr.f32.gmra.mrb[0].mxu0 %v217
    %v285 = vpop.f32.mrb[0].mxu0
    %v286 = vadd.f32 %v62, %v285
    %v287 = vpop.f32.mrb[0].mxu0
    %288 = vdwg.mxu0
    %289 = vset.pattern.permute.xlu0 2
    %290 = vperm.xlu0 %289, %v26
    %v291 = vpop.permute.xlu0 %290
    %v293 = vmul.f32 %v291, %v47
    %v294 = vadd.f32 %v293, %v54
    %295 = vmatprep.subr.mxu0 0.0
    %296 = vmatpush1.msra.mxu0 %v29
    %297 = vmatprep.subr.mxu0 0.0
    %298 = vmatpush1.msra.mxu0 %v30
    %299 = vmatprep.subr.mxu0 0.0
    %300 = vmatpush1.msra.mxu0 %v31
    %301 = vmatprep.subr.mxu0 0.0
    %302 = vmatpush1.msra.mxu0 %v32
    %303 = vmatprep.subr.mxu0 0.0
    %304 = vmatpush1.msra.mxu0 0.0
    %305 = vmatprep.subr.mxu0 0.0
    %306 = vmatpush1.msra.mxu0 0.0
    %307 = vmatprep.subr.mxu0 0.0
    %308 = vmatpush1.msra.mxu0 0.0
    %309 = vmatprep.subr.mxu0 0.0
    %310 = vmatpush1.msra.mxu0 0.0
    %311 = vmatprep.subr.mxu0 0.0
    %312 = vmatpush1.msra.mxu0 0.0
    %313 = vmatprep.subr.mxu0 0.0
    %314 = vmatpush1.msra.mxu0 0.0
    %315 = vmatprep.subr.mxu0 0.0
    %316 = vmatpush1.msra.mxu0 0.0
    %317 = vmatprep.subr.mxu0 0.0
    %318 = vmatpush1.msra.mxu0 0.0
    %319 = vmatprep.subr.mxu0 0.0
    %320 = vmatpush1.msra.mxu0 0.0
    %321 = vmatprep.subr.mxu0 0.0
    %322 = vmatpush1.msra.mxu0 0.0
    %323 = vmatprep.subr.mxu0 0.0
    %324 = vmatpush1.msra.mxu0 0.0
    %325 = vmatprep.subr.mxu0 0.0
    %326 = vmatpush1.msra.mxu0 0.0
    %327 = vmatprep.subr.mxu0 0.0
    %328 = vmatpush1.msra.mxu0 0.0
    %329 = vmatprep.subr.mxu0 0.0
    %330 = vmatpush1.msra.mxu0 0.0
    %331 = vmatprep.subr.mxu0 0.0
    %332 = vmatpush1.msra.mxu0 0.0
    %333 = vmatprep.subr.mxu0 0.0
    %334 = vmatpush1.msra.mxu0 0.0
    %335 = vmatprep.subr.mxu0 0.0
    %336 = vmatpush1.msra.mxu0 0.0
    %337 = vmatprep.subr.mxu0 0.0
    %338 = vmatpush1.msra.mxu0 0.0
    %339 = vmatprep.subr.mxu0 0.0
    %340 = vmatpush1.msra.mxu0 0.0
    %341 = vmatprep.subr.mxu0 0.0
    %342 = vmatpush1.msra.mxu0 0.0
    %343 = vmatprep.subr.mxu0 0.0
    %344 = vmatpush1.msra.mxu0 0.0
    %345 = vmatprep.subr.mxu0 0.0
    %346 = vmatpush1.msra.mxu0 0.0
    %347 = vmatprep.subr.mxu0 0.0
    %348 = vmatpush1.msra.mxu0 0.0
    %349 = vmatprep.subr.mxu0 0.0
    %350 = vmatpush1.msra.mxu0 0.0
    %351 = vmatprep.subr.mxu0 0.0
    %352 = vmatpush1.msra.mxu0 0.0
    %353 = vmatprep.subr.mxu0 0.0
    %354 = vmatpush1.msra.mxu0 0.0
    %355 = vmatprep.subr.mxu0 0.0
    %356 = vmatpush1.msra.mxu0 0.0
    %357 = vmatprep.subr.mxu0 0.0
    %358 = vmatpush1.msra.mxu0 0.0
    %359 = vmatprep.mubr.f32.mxu0 0.0
    %360 = vmatmul.mubr.f32.gmra.mrb[0].mxu0 %v217
    %v361 = vpop.f32.mrb[0].mxu0
    %v362 = vadd.f32 0.0, %v361
    %v363 = vpop.f32.mrb[0].mxu0
    %364 = vdwg.mxu0
    %v365 = vadd.f32 %v294, %v362
    %v366 = vtanh.pop %v365
    %v368 = vsel %vm64, %v366, 0
    %370 = vmatprep.subr.mxu0 0.0
    %371 = vmatpush1.msra.mxu0 %v33
    %372 = vmatprep.subr.mxu0 0.0
    %373 = vmatpush1.msra.mxu0 %v34
    %374 = vmatprep.subr.mxu0 0.0
    %375 = vmatpush1.msra.mxu0 %v35
    %376 = vmatprep.subr.mxu0 0.0
    %377 = vmatpush1.msra.mxu0 %v36
    %378 = vmatprep.subr.mxu0 0.0
    %379 = vmatpush1.msra.mxu0 0.0
    %380 = vmatprep.subr.mxu0 0.0
    %381 = vmatpush1.msra.mxu0 0.0
    %382 = vmatprep.subr.mxu0 0.0
    %383 = vmatpush1.msra.mxu0 0.0
    %384 = vmatprep.subr.mxu0 0.0
    %385 = vmatpush1.msra.mxu0 0.0
    %386 = vmatprep.subr.mxu0 0.0
    %387 = vmatpush1.msra.mxu0 0.0
    %388 = vmatprep.subr.mxu0 0.0
    %389 = vmatpush1.msra.mxu0 0.0
    %390 = vmatprep.subr.mxu0 0.0
    %391 = vmatpush1.msra.mxu0 0.0
    %392 = vmatprep.subr.mxu0 0.0
    %393 = vmatpush1.msra.mxu0 0.0
    %394 = vmatprep.subr.mxu0 0.0
    %395 = vmatpush1.msra.mxu0 0.0
    %396 = vmatprep.subr.mxu0 0.0
    %397 = vmatpush1.msra.mxu0 0.0
    %398 = vmatprep.subr.mxu0 0.0
    %399 = vmatpush1.msra.mxu0 0.0
    %400 = vmatprep.subr.mxu0 0.0
    %401 = vmatpush1.msra.mxu0 0.0
    %402 = vmatprep.subr.mxu0 0.0
    %403 = vmatpush1.msra.mxu0 0.0
    %404 = vmatprep.subr.mxu0 0.0
    %405 = vmatpush1.msra.mxu0 0.0
    %406 = vmatprep.subr.mxu0 0.0
    %407 = vmatpush1.msra.mxu0 0.0
    %408 = vmatprep.subr.mxu0 0.0
    %409 = vmatpush1.msra.mxu0 0.0
    %410 = vmatprep.subr.mxu0 0.0
    %411 = vmatpush1.msra.mxu0 0.0
    %412 = vmatprep.subr.mxu0 0.0
    %413 = vmatpush1.msra.mxu0 0.0
    %414 = vmatprep.subr.mxu0 0.0
    %415 = vmatpush1.msra.mxu0 0.0
    %416 = vmatprep.subr.mxu0 0.0
    %417 = vmatpush1.msra.mxu0 0.0
    %418 = vmatprep.subr.mxu0 0.0
    %419 = vmatpush1.msra.mxu0 0.0
    %420 = vmatprep.subr.mxu0 0.0
    %421 = vmatpush1.msra.mxu0 0.0
    %422 = vmatprep.subr.mxu0 0.0
    %423 = vmatpush1.msra.mxu0 0.0
    %424 = vmatprep.subr.mxu0 0.0
    %425 = vmatpush1.msra.mxu0 0.0
    %426 = vmatprep.subr.mxu0 0.0
    %427 = vmatpush1.msra.mxu0 0.0
    %428 = vmatprep.subr.mxu0 0.0
    %429 = vmatpush1.msra.mxu0 0.0
    %430 = vmatprep.subr.mxu0 0.0
    %431 = vmatpush1.msra.mxu0 0.0
    %432 = vmatprep.subr.mxu0 0.0
    %433 = vmatpush1.msra.mxu0 0.0
    %434 = vmatprep.mubr.f32.mxu0 0.0
    %435 = vmatmul.mubr.f32.gmra.mrb[0].mxu0 %v368
    %v436 = vpop.f32.mrb[0].mxu0
    %v437 = vadd.f32 %v62, %v436
    %v438 = vpop.f32.mrb[0].mxu0
    %439 = vdwg.mxu0
    %440 = vset.pattern.permute.xlu0 3
    %441 = vperm.xlu0 %440, %v26
    %v442 = vpop.permute.xlu0 %441
    %v444 = vmul.f32 %v442, %v47
    %v445 = vadd.f32 %v444, %v54
    %446 = vmatprep.subr.mxu0 0.0
    %447 = vmatpush1.msra.mxu0 %v29
    %448 = vmatprep.subr.mxu0 0.0
    %449 = vmatpush1.msra.mxu0 %v30
    %450 = vmatprep.subr.mxu0 0.0
    %451 = vmatpush1.msra.mxu0 %v31
    %452 = vmatprep.subr.mxu0 0.0
    %453 = vmatpush1.msra.mxu0 %v32
    %454 = vmatprep.subr.mxu0 0.0
    %455 = vmatpush1.msra.mxu0 0.0
    %456 = vmatprep.subr.mxu0 0.0
    %457 = vmatpush1.msra.mxu0 0.0
    %458 = vmatprep.subr.mxu0 0.0
    %459 = vmatpush1.msra.mxu0 0.0
    %460 = vmatprep.subr.mxu0 0.0
    %461 = vmatpush1.msra.mxu0 0.0
    %462 = vmatprep.subr.mxu0 0.0
    %463 = vmatpush1.msra.mxu0 0.0
    %464 = vmatprep.subr.mxu0 0.0
    %465 = vmatpush1.msra.mxu0 0.0
    %466 = vmatprep.subr.mxu0 0.0
    %467 = vmatpush1.msra.mxu0 0.0
    %468 = vmatprep.subr.mxu0 0.0
    %469 = vmatpush1.msra.mxu0 0.0
    %470 = vmatprep.subr.mxu0 0.0
    %471 = vmatpush1.msra.mxu0 0.0
    %472 = vmatprep.subr.mxu0 0.0
    %473 = vmatpush1.msra.mxu0 0.0
    %474 = vmatprep.subr.mxu0 0.0
    %475 = vmatpush1.msra.mxu0 0.0
    %476 = vmatprep.subr.mxu0 0.0
    %477 = vmatpush1.msra.mxu0 0.0
    %478 = vmatprep.subr.mxu0 0.0
    %479 = vmatpush1.msra.mxu0 0.0
    %480 = vmatprep.subr.mxu0 0.0
    %481 = vmatpush1.msra.mxu0 0.0
    %482 = vmatprep.subr.mxu0 0.0
    %483 = vmatpush1.msra.mxu0 0.0
    %484 = vmatprep.subr.mxu0 0.0
    %485 = vmatpush1.msra.mxu0 0.0
    %486 = vmatprep.subr.mxu0 0.0
    %487 = vmatpush1.msra.mxu0 0.0
    %488 = vmatprep.subr.mxu0 0.0
    %489 = vmatpush1.msra.mxu0 0.0
    %490 = vmatprep.subr.mxu0 0.0
    %491 = vmatpush1.msra.mxu0 0.0
    %492 = vmatprep.subr.mxu0 0.0
    %493 = vmatpush1.msra.mxu0 0.0
    %494 = vmatprep.subr.mxu0 0.0
    %495 = vmatpush1.msra.mxu0 0.0
    %496 = vmatprep.subr.mxu0 0.0
    %497 = vmatpush1.msra.mxu0 0.0
    %498 = vmatprep.subr.mxu0 0.0
    %499 = vmatpush1.msra.mxu0 0.0
    %500 = vmatprep.subr.mxu0 0.0
    %501 = vmatpush1.msra.mxu0 0.0
    %502 = vmatprep.subr.mxu0 0.0
    %503 = vmatpush1.msra.mxu0 0.0
    %504 = vmatprep.subr.mxu0 0.0
    %505 = vmatpush1.msra.mxu0 0.0
    %506 = vmatprep.subr.mxu0 0.0
    %507 = vmatpush1.msra.mxu0 0.0
    %508 = vmatprep.subr.mxu0 0.0
    %509 = vmatpush1.msra.mxu0 0.0
    %510 = vmatprep.mubr.f32.mxu0 0.0
    %511 = vmatmul.mubr.f32.gmra.mrb[0].mxu0 %v368
    %v512 = vpop.f32.mrb[0].mxu0
    %v513 = vadd.f32 0.0, %v512
    %v514 = vpop.f32.mrb[0].mxu0
    %515 = vdwg.mxu0
    %v516 = vadd.f32 %v445, %v513
    %v517 = vtanh.pop %v516
    %v519 = vsel %vm64, %v517, 0
    %521 = vmatprep.subr.mxu0 0.0
    %522 = vmatpush1.msra.mxu0 %v33
    %523 = vmatprep.subr.mxu0 0.0
    %524 = vmatpush1.msra.mxu0 %v34
    %525 = vmatprep.subr.mxu0 0.0
    %526 = vmatpush1.msra.mxu0 %v35
    %527 = vmatprep.subr.mxu0 0.0
    %528 = vmatpush1.msra.mxu0 %v36
    %529 = vmatprep.subr.mxu0 0.0
    %530 = vmatpush1.msra.mxu0 0.0
    %531 = vmatprep.subr.mxu0 0.0
    %532 = vmatpush1.msra.mxu0 0.0
    %533 = vmatprep.subr.mxu0 0.0
    %534 = vmatpush1.msra.mxu0 0.0
    %535 = vmatprep.subr.mxu0 0.0
    %536 = vmatpush1.msra.mxu0 0.0
    %537 = vmatprep.subr.mxu0 0.0
    %538 = vmatpush1.msra.mxu0 0.0
    %539 = vmatprep.subr.mxu0 0.0
    %540 = vmatpush1.msra.mxu0 0.0
    %541 = vmatprep.subr.mxu0 0.0
    %542 = vmatpush1.msra.mxu0 0.0
    %543 = vmatprep.subr.mxu0 0.0
    %544 = vmatpush1.msra.mxu0 0.0
    %545 = vmatprep.subr.mxu0 0.0
    %546 = vmatpush1.msra.mxu0 0.0
    %547 = vmatprep.subr.mxu0 0.0
    %548 = vmatpush1.msra.mxu0 0.0
    %549 = vmatprep.subr.mxu0 0.0
    %550 = vmatpush1.msra.mxu0 0.0
    %551 = vmatprep.subr.mxu0 0.0
    %552 = vmatpush1.msra.mxu0 0.0
    %553 = vmatprep.subr.mxu0 0.0
    %554 = vmatpush1.msra.mxu0 0.0
    %555 = vmatprep.subr.mxu0 0.0
    %556 = vmatpush1.msra.mxu0 0.0
    %557 = vmatprep.subr.mxu0 0.0
    %558 = vmatpush1.msra.mxu0 0.0
    %559 = vmatprep.subr.mxu0 0.0
    %560 = vmatpush1.msra.mxu0 0.0
    %561 = vmatprep.subr.mxu0 0.0
    %562 = vmatpush1.msra.mxu0 0.0
    %563 = vmatprep.subr.mxu0 0.0
    %564 = vmatpush1.msra.mxu0 0.0
    %565 = vmatprep.subr.mxu0 0.0
    %566 = vmatpush1.msra.mxu0 0.0
    %567 = vmatprep.subr.mxu0 0.0
    %568 = vmatpush1.msra.mxu0 0.0
    %569 = vmatprep.subr.mxu0 0.0
    %570 = vmatpush1.msra.mxu0 0.0
    %571 = vmatprep.subr.mxu0 0.0
    %572 = vmatpush1.msra.mxu0 0.0
    %573 = vmatprep.subr.mxu0 0.0
    %574 = vmatpush1.msra.mxu0 0.0
    %575 = vmatprep.subr.mxu0 0.0
    %576 = vmatpush1.msra.mxu0 0.0
    %577 = vmatprep.subr.mxu0 0.0
    %578 = vmatpush1.msra.mxu0 0.0
    %579 = vmatprep.subr.mxu0 0.0
    %580 = vmatpush1.msra.mxu0 0.0
    %581 = vmatprep.subr.mxu0 0.0
    %582 = vmatpush1.msra.mxu0 0.0
    %583 = vmatprep.subr.mxu0 0.0
    %584 = vmatpush1.msra.mxu0 0.0
    %585 = vmatprep.mubr.f32.mxu0 0.0
    %586 = vmatmul.mubr.f32.gmra.mrb[0].mxu0 %v519
    %v587 = vpop.f32.mrb[0].mxu0
    %v588 = vadd.f32 %v62, %v587
    %v589 = vpop.f32.mrb[0].mxu0
    %590 = vdwg.mxu0
    %591 = vset.pattern.permute.xlu0 4
    %592 = vperm.xlu0 %591, %v26
    %v593 = vpop.permute.xlu0 %592
    %v595 = vmul.f32 %v593, %v47
    %v596 = vadd.f32 %v595, %v54
    %597 = vmatprep.subr.mxu0 0.0
    %598 = vmatpush1.msra.mxu0 %v29
    %599 = vmatprep.subr.mxu0 0.0
    %600 = vmatpush1.msra.mxu0 %v30
    %601 = vmatprep.subr.mxu0 0.0
    %602 = vmatpush1.msra.mxu0 %v31
    %603 = vmatprep.subr.mxu0 0.0
    %604 = vmatpush1.msra.mxu0 %v32
    %605 = vmatprep.subr.mxu0 0.0
    %606 = vmatpush1.msra.mxu0 0.0
    %607 = vmatprep.subr.mxu0 0.0
    %608 = vmatpush1.msra.mxu0 0.0
    %609 = vmatprep.subr.mxu0 0.0
    %610 = vmatpush1.msra.mxu0 0.0
    %611 = vmatprep.subr.mxu0 0.0
    %612 = vmatpush1.msra.mxu0 0.0
    %613 = vmatprep.subr.mxu0 0.0
    %614 = vmatpush1.msra.mxu0 0.0
    %615 = vmatprep.subr.mxu0 0.0
    %616 = vmatpush1.msra.mxu0 0.0
    %617 = vmatprep.subr.mxu0 0.0
    %618 = vmatpush1.msra.mxu0 0.0
    %619 = vmatprep.subr.mxu0 0.0
    %620 = vmatpush1.msra.mxu0 0.0
    %621 = vmatprep.subr.mxu0 0.0
    %622 = vmatpush1.msra.mxu0 0.0
    %623 = vmatprep.subr.mxu0 0.0
    %624 = vmatpush1.msra.mxu0 0.0
    %625 = vmatprep.subr.mxu0 0.0
    %626 = vmatpush1.msra.mxu0 0.0
    %627 = vmatprep.subr.mxu0 0.0
    %628 = vmatpush1.msra.mxu0 0.0
    %629 = vmatprep.subr.mxu0 0.0
    %630 = vmatpush1.msra.mxu0 0.0
    %631 = vmatprep.subr.mxu0 0.0
    %632 = vmatpush1.msra.mxu0 0.0
    %633 = vmatprep.subr.mxu0 0.0
    %634 = vmatpush1.msra.mxu0 0.0
    %635 = vmatprep.subr.mxu0 0.0
    %636 = vmatpush1.msra.mxu0 0.0
    %637 = vmatprep.subr.mxu0 0.0
    %638 = vmatpush1.msra.mxu0 0.0
    %639 = vmatprep.subr.mxu0 0.0
    %640 = vmatpush1.msra.mxu0 0.0
    %641 = vmatprep.subr.mxu0 0.0
    %642 = vmatpush1.msra.mxu0 0.0
    %643 = vmatprep.subr.mxu0 0.0
    %644 = vmatpush1.msra.mxu0 0.0
    %645 = vmatprep.subr.mxu0 0.0
    %646 = vmatpush1.msra.mxu0 0.0
    %647 = vmatprep.subr.mxu0 0.0
    %648 = vmatpush1.msra.mxu0 0.0
    %649 = vmatprep.subr.mxu0 0.0
    %650 = vmatpush1.msra.mxu0 0.0
    %651 = vmatprep.subr.mxu0 0.0
    %652 = vmatpush1.msra.mxu0 0.0
    %653 = vmatprep.subr.mxu0 0.0
    %654 = vmatpush1.msra.mxu0 0.0
    %655 = vmatprep.subr.mxu0 0.0
    %656 = vmatpush1.msra.mxu0 0.0
    %657 = vmatprep.subr.mxu0 0.0
    %658 = vmatpush1.msra.mxu0 0.0
    %659 = vmatprep.subr.mxu0 0.0
    %660 = vmatpush1.msra.mxu0 0.0
    %661 = vmatprep.mubr.f32.mxu0 0.0
    %662 = vmatmul.mubr.f32.gmra.mrb[0].mxu0 %v519
    %v663 = vpop.f32.mrb[0].mxu0
    %v664 = vadd.f32 0.0, %v663
    %v665 = vpop.f32.mrb[0].mxu0
    %666 = vdwg.mxu0
    %v667 = vadd.f32 %v596, %v664
    %v668 = vtanh.pop %v667
    %v670 = vsel %vm64, %v668, 0
    %672 = vmatprep.subr.mxu0 0.0
    %673 = vmatpush1.msra.mxu0 %v33
    %674 = vmatprep.subr.mxu0 0.0
    %675 = vmatpush1.msra.mxu0 %v34
    %676 = vmatprep.subr.mxu0 0.0
    %677 = vmatpush1.msra.mxu0 %v35
    %678 = vmatprep.subr.mxu0 0.0
    %679 = vmatpush1.msra.mxu0 %v36
    %680 = vmatprep.subr.mxu0 0.0
    %681 = vmatpush1.msra.mxu0 0.0
    %682 = vmatprep.subr.mxu0 0.0
    %683 = vmatpush1.msra.mxu0 0.0
    %684 = vmatprep.subr.mxu0 0.0
    %685 = vmatpush1.msra.mxu0 0.0
    %686 = vmatprep.subr.mxu0 0.0
    %687 = vmatpush1.msra.mxu0 0.0
    %688 = vmatprep.subr.mxu0 0.0
    %689 = vmatpush1.msra.mxu0 0.0
    %690 = vmatprep.subr.mxu0 0.0
    %691 = vmatpush1.msra.mxu0 0.0
    %692 = vmatprep.subr.mxu0 0.0
    %693 = vmatpush1.msra.mxu0 0.0
    %694 = vmatprep.subr.mxu0 0.0
    %695 = vmatpush1.msra.mxu0 0.0
    %696 = vmatprep.subr.mxu0 0.0
    %697 = vmatpush1.msra.mxu0 0.0
    %698 = vmatprep.subr.mxu0 0.0
    %699 = vmatpush1.msra.mxu0 0.0
    %700 = vmatprep.subr.mxu0 0.0
    %701 = vmatpush1.msra.mxu0 0.0
    %702 = vmatprep.subr.mxu0 0.0
    %703 = vmatpush1.msra.mxu0 0.0
    %704 = vmatprep.subr.mxu0 0.0
    %705 = vmatpush1.msra.mxu0 0.0
    %706 = vmatprep.subr.mxu0 0.0
    %707 = vmatpush1.msra.mxu0 0.0
    %708 = vmatprep.subr.mxu0 0.0
    %709 = vmatpush1.msra.mxu0 0.0
    %710 = vmatprep.subr.mxu0 0.0
    %711 = vmatpush1.msra.mxu0 0.0
    %712 = vmatprep.subr.mxu0 0.0
    %713 = vmatpush1.msra.mxu0 0.0
    %714 = vmatprep.subr.mxu0 0.0
    %715 = vmatpush1.msra.mxu0 0.0
    %716 = vmatprep.subr.mxu0 0.0
    %717 = vmatpush1.msra.mxu0 0.0
    %718 = vmatprep.subr.mxu0 0.0
    %719 = vmatpush1.msra.mxu0 0.0
    %720 = vmatprep.subr.mxu0 0.0
    %721 = vmatpush1.msra.mxu0 0.0
    %722 = vmatprep.subr.mxu0 0.0
    %723 = vmatpush1.msra.mxu0 0.0
    %724 = vmatprep.subr.mxu0 0.0
    %725 = vmatpush1.msra.mxu0 0.0
    %726 = vmatprep.subr.mxu0 0.0
    %727 = vmatpush1.msra.mxu0 0.0
    %728 = vmatprep.subr.mxu0 0.0
    %729 = vmatpush1.msra.mxu0 0.0
    %730 = vmatprep.subr.mxu0 0.0
    %731 = vmatpush1.msra.mxu0 0.0
    %732 = vmatprep.subr.mxu0 0.0
    %733 = vmatpush1.msra.mxu0 0.0
    %734 = vmatprep.subr.mxu0 0.0
    %735 = vmatpush1.msra.mxu0 0.0
    %736 = vmatprep.mubr.f32.mxu0 0.0
    %737 = vmatmul.mubr.f32.gmra.mrb[0].mxu0 %v670
    %v738 = vpop.f32.mrb[0].mxu0
    %v739 = vadd.f32 %v62, %v738
    %v740 = vpop.f32.mrb[0].mxu0
    %741 = vdwg.mxu0
    %742 = vset.pattern.permute.xlu0 5
    %743 = vperm.xlu0 %742, %v26
    %v744 = vpop.permute.xlu0 %743
    %v746 = vmul.f32 %v744, %v47
    %v747 = vadd.f32 %v746, %v54
    %748 = vmatprep.subr.mxu0 0.0
    %749 = vmatpush1.msra.mxu0 %v29
    %750 = vmatprep.subr.mxu0 0.0
    %751 = vmatpush1.msra.mxu0 %v30
    %752 = vmatprep.subr.mxu0 0.0
    %753 = vmatpush1.msra.mxu0 %v31
    %754 = vmatprep.subr.mxu0 0.0
    %755 = vmatpush1.msra.mxu0 %v32
    %756 = vmatprep.subr.mxu0 0.0
    %757 = vmatpush1.msra.mxu0 0.0
    %758 = vmatprep.subr.mxu0 0.0
    %759 = vmatpush1.msra.mxu0 0.0
    %760 = vmatprep.subr.mxu0 0.0
    %761 = vmatpush1.msra.mxu0 0.0
    %762 = vmatprep.subr.mxu0 0.0
    %763 = vmatpush1.msra.mxu0 0.0
    %764 = vmatprep.subr.mxu0 0.0
    %765 = vmatpush1.msra.mxu0 0.0
    %766 = vmatprep.subr.mxu0 0.0
    %767 = vmatpush1.msra.mxu0 0.0
    %768 = vmatprep.subr.mxu0 0.0
    %769 = vmatpush1.msra.mxu0 0.0
    %770 = vmatprep.subr.mxu0 0.0
    %771 = vmatpush1.msra.mxu0 0.0
    %772 = vmatprep.subr.mxu0 0.0
    %773 = vmatpush1.msra.mxu0 0.0
    %774 = vmatprep.subr.mxu0 0.0
    %775 = vmatpush1.msra.mxu0 0.0
    %776 = vmatprep.subr.mxu0 0.0
    %777 = vmatpush1.msra.mxu0 0.0
    %778 = vmatprep.subr.mxu0 0.0
    %779 = vmatpush1.msra.mxu0 0.0
    %780 = vmatprep.subr.mxu0 0.0
    %781 = vmatpush1.msra.mxu0 0.0
    %782 = vmatprep.subr.mxu0 0.0
    %783 = vmatpush1.msra.mxu0 0.0
    %784 = vmatprep.subr.mxu0 0.0
    %785 = vmatpush1.msra.mxu0 0.0
    %786 = vmatprep.subr.mxu0 0.0
    %787 = vmatpush1.msra.mxu0 0.0
    %788 = vmatprep.subr.mxu0 0.0
    %789 = vmatpush1.msra.mxu0 0.0
    %790 = vmatprep.subr.mxu0 0.0
    %791 = vmatpush1.msra.mxu0 0.0
    %792 = vmatprep.subr.mxu0 0.0
    %793 = vmatpush1.msra.mxu0 0.0
    %794 = vmatprep.subr.mxu0 0.0
    %795 = vmatpush1.msra.mxu0 0.0
    %796 = vmatprep.subr.mxu0 0.0
    %797 = vmatpush1.msra.mxu0 0.0
    %798 = vmatprep.subr.mxu0 0.0
    %799 = vmatpush1.msra.mxu0 0.0
    %800 = vmatprep.subr.mxu0 0.0
    %801 = vmatpush1.msra.mxu0 0.0
    %802 = vmatprep.subr.mxu0 0.0
    %803 = vmatpush1.msra.mxu0 0.0
    %804 = vmatprep.subr.mxu0 0.0
    %805 = vmatpush1.msra.mxu0 0.0
    %806 = vmatprep.subr.mxu0 0.0
    %807 = vmatpush1.msra.mxu0 0.0
    %808 = vmatprep.subr.mxu0 0.0
    %809 = vmatpush1.msra.mxu0 0.0
    %810 = vmatprep.subr.mxu0 0.0
    %811 = vmatpush1.msra.mxu0 0.0
    %812 = vmatprep.mubr.f32.mxu0 0.0
    %813 = vmatmul.mubr.f32.gmra.mrb[0].mxu0 %v670
    %v814 = vpop.f32.mrb[0].mxu0
    %v815 = vadd.f32 0.0, %v814
    %v816 = vpop.f32.mrb[0].mxu0
    %817 = vdwg.mxu0
    %v818 = vadd.f32 %v747, %v815
    %v819 = vtanh.pop %v818
    %v821 = vsel %vm64, %v819, 0
    %823 = vmatprep.subr.mxu0 0.0
    %824 = vmatpush1.msra.mxu0 %v33
    %825 = vmatprep.subr.mxu0 0.0
    %826 = vmatpush1.msra.mxu0 %v34
    %827 = vmatprep.subr.mxu0 0.0
    %828 = vmatpush1.msra.mxu0 %v35
    %829 = vmatprep.subr.mxu0 0.0
    %830 = vmatpush1.msra.mxu0 %v36
    %831 = vmatprep.subr.mxu0 0.0
    %832 = vmatpush1.msra.mxu0 0.0
    %833 = vmatprep.subr.mxu0 0.0
    %834 = vmatpush1.msra.mxu0 0.0
    %835 = vmatprep.subr.mxu0 0.0
    %836 = vmatpush1.msra.mxu0 0.0
    %837 = vmatprep.subr.mxu0 0.0
    %838 = vmatpush1.msra.mxu0 0.0
    %839 = vmatprep.subr.mxu0 0.0
    %840 = vmatpush1.msra.mxu0 0.0
    %841 = vmatprep.subr.mxu0 0.0
    %842 = vmatpush1.msra.mxu0 0.0
    %843 = vmatprep.subr.mxu0 0.0
    %844 = vmatpush1.msra.mxu0 0.0
    %845 = vmatprep.subr.mxu0 0.0
    %846 = vmatpush1.msra.mxu0 0.0
    %847 = vmatprep.subr.mxu0 0.0
    %848 = vmatpush1.msra.mxu0 0.0
    %849 = vmatprep.subr.mxu0 0.0
    %850 = vmatpush1.msra.mxu0 0.0
    %851 = vmatprep.subr.mxu0 0.0
    %852 = vmatpush1.msra.mxu0 0.0
    %853 = vmatprep.subr.mxu0 0.0
    %854 = vmatpush1.msra.mxu0 0.0
    %855 = vmatprep.subr.mxu0 0.0
    %856 = vmatpush1.msra.mxu0 0.0
    %857 = vmatprep.subr.mxu0 0.0
    %858 = vmatpush1.msra.mxu0 0.0
    %859 = vmatprep.subr.mxu0 0.0
    %860 = vmatpush1.msra.mxu0 0.0
    %861 = vmatprep.subr.mxu0 0.0
    %862 = vmatpush1.msra.mxu0 0.0
    %863 = vmatprep.subr.mxu0 0.0
    %864 = vmatpush1.msra.mxu0 0.0
    %865 = vmatprep.subr.mxu0 0.0
    %866 = vmatpush1.msra.mxu0 0.0
    %867 = vmatprep.subr.mxu0 0.0
    %868 = vmatpush1.msra.mxu0 0.0
    %869 = vmatprep.subr.mxu0 0.0
    %870 = vmatpush1.msra.mxu0 0.0
    %871 = vmatprep.subr.mxu0 0.0
    %872 = vmatpush1.msra.mxu0 0.0
    %873 = vmatprep.subr.mxu0 0.0
    %874 = vmatpush1.msra.mxu0 0.0
    %875 = vmatprep.subr.mxu0 0.0
    %876 = vmatpush1.msra.mxu0 0.0
    %877 = vmatprep.subr.mxu0 0.0
    %878 = vmatpush1.msra.mxu0 0.0
    %879 = vmatprep.subr.mxu0 0.0
    %880 = vmatpush1.msra.mxu0 0.0
    %881 = vmatprep.subr.mxu0 0.0
    %882 = vmatpush1.msra.mxu0 0.0
    %883 = vmatprep.subr.mxu0 0.0
    %884 = vmatpush1.msra.mxu0 0.0
    %885 = vmatprep.subr.mxu0 0.0
    %886 = vmatpush1.msra.mxu0 0.0
    %887 = vmatprep.mubr.f32.mxu0 0.0
    %888 = vmatmul.mubr.f32.gmra.mrb[0].mxu0 %v821
    %v889 = vpop.f32.mrb[0].mxu0
    %v890 = vadd.f32 %v62, %v889
    %v891 = vpop.f32.mrb[0].mxu0
    %892 = vdwg.mxu0
    %893 = vset.pattern.permute.xlu0 6
    %894 = vperm.xlu0 %893, %v26
    %v895 = vpop.permute.xlu0 %894
    %v897 = vmul.f32 %v895, %v47
    %v898 = vadd.f32 %v897, %v54
    %899 = vmatprep.subr.mxu0 0.0
    %900 = vmatpush1.msra.mxu0 %v29
    %901 = vmatprep.subr.mxu0 0.0
    %902 = vmatpush1.msra.mxu0 %v30
    %903 = vmatprep.subr.mxu0 0.0
    %904 = vmatpush1.msra.mxu0 %v31
    %905 = vmatprep.subr.mxu0 0.0
    %906 = vmatpush1.msra.mxu0 %v32
    %907 = vmatprep.subr.mxu0 0.0
    %908 = vmatpush1.msra.mxu0 0.0
    %909 = vmatprep.subr.mxu0 0.0
    %910 = vmatpush1.msra.mxu0 0.0
    %911 = vmatprep.subr.mxu0 0.0
    %912 = vmatpush1.msra.mxu0 0.0
    %913 = vmatprep.subr.mxu0 0.0
    %914 = vmatpush1.msra.mxu0 0.0
    %915 = vmatprep.subr.mxu0 0.0
    %916 = vmatpush1.msra.mxu0 0.0
    %917 = vmatprep.subr.mxu0 0.0
    %918 = vmatpush1.msra.mxu0 0.0
    %919 = vmatprep.subr.mxu0 0.0
    %920 = vmatpush1.msra.mxu0 0.0
    %921 = vmatprep.subr.mxu0 0.0
    %922 = vmatpush1.msra.mxu0 0.0
    %923 = vmatprep.subr.mxu0 0.0
    %924 = vmatpush1.msra.mxu0 0.0
    %925 = vmatprep.subr.mxu0 0.0
    %926 = vmatpush1.msra.mxu0 0.0
    %927 = vmatprep.subr.mxu0 0.0
    %928 = vmatpush1.msra.mxu0 0.0
    %929 = vmatprep.subr.mxu0 0.0
    %930 = vmatpush1.msra.mxu0 0.0
    %931 = vmatprep.subr.mxu0 0.0
    %932 = vmatpush1.msra.mxu0 0.0
    %933 = vmatprep.subr.mxu0 0.0
    %934 = vmatpush1.msra.mxu0 0.0
    %935 = vmatprep.subr.mxu0 0.0
    %936 = vmatpush1.msra.mxu0 0.0
    %937 = vmatprep.subr.mxu0 0.0
    %938 = vmatpush1.msra.mxu0 0.0
    %939 = vmatprep.subr.mxu0 0.0
    %940 = vmatpush1.msra.mxu0 0.0
    %941 = vmatprep.subr.mxu0 0.0
    %942 = vmatpush1.msra.mxu0 0.0
    %943 = vmatprep.subr.mxu0 0.0
    %944 = vmatpush1.msra.mxu0 0.0
    %945 = vmatprep.subr.mxu0 0.0
    %946 = vmatpush1.msra.mxu0 0.0
    %947 = vmatprep.subr.mxu0 0.0
    %948 = vmatpush1.msra.mxu0 0.0
    %949 = vmatprep.subr.mxu0 0.0
    %950 = vmatpush1.msra.mxu0 0.0
    %951 = vmatprep.subr.mxu0 0.0
    %952 = vmatpush1.msra.mxu0 0.0
    %953 = vmatprep.subr.mxu0 0.0
    %954 = vmatpush1.msra.mxu0 0.0
    %955 = vmatprep.subr.mxu0 0.0
    %956 = vmatpush1.msra.mxu0 0.0
    %957 = vmatprep.subr.mxu0 0.0
    %958 = vmatpush1.msra.mxu0 0.0
    %959 = vmatprep.subr.mxu0 0.0
    %960 = vmatpush1.msra.mxu0 0.0
    %961 = vmatprep.subr.mxu0 0.0
    %962 = vmatpush1.msra.mxu0 0.0
    %963 = vmatprep.mubr.f32.mxu0 0.0
    %964 = vmatmul.mubr.f32.gmra.mrb[0].mxu0 %v821
    %v965 = vpop.f32.mrb[0].mxu0
    %v966 = vadd.f32 0.0, %v965
    %v967 = vpop.f32.mrb[0].mxu0
    %968 = vdwg.mxu0
    %v969 = vadd.f32 %v898, %v966
    %v970 = vtanh.pop %v969
    %v972 = vsel %vm64, %v970, 0
    %974 = vmatprep.subr.mxu0 0.0
    %975 = vmatpush1.msra.mxu0 %v33
    %976 = vmatprep.subr.mxu0 0.0
    %977 = vmatpush1.msra.mxu0 %v34
    %978 = vmatprep.subr.mxu0 0.0
    %979 = vmatpush1.msra.mxu0 %v35
    %980 = vmatprep.subr.mxu0 0.0
    %981 = vmatpush1.msra.mxu0 %v36
    %982 = vmatprep.subr.mxu0 0.0
    %983 = vmatpush1.msra.mxu0 0.0
    %984 = vmatprep.subr.mxu0 0.0
    %985 = vmatpush1.msra.mxu0 0.0
    %986 = vmatprep.subr.mxu0 0.0
    %987 = vmatpush1.msra.mxu0 0.0
    %988 = vmatprep.subr.mxu0 0.0
    %989 = vmatpush1.msra.mxu0 0.0
    %990 = vmatprep.subr.mxu0 0.0
    %991 = vmatpush1.msra.mxu0 0.0
    %992 = vmatprep.subr.mxu0 0.0
    %993 = vmatpush1.msra.mxu0 0.0
    %994 = vmatprep.subr.mxu0 0.0
    %995 = vmatpush1.msra.mxu0 0.0
    %996 = vmatprep.subr.mxu0 0.0
    %997 = vmatpush1.msra.mxu0 0.0
    %998 = vmatprep.subr.mxu0 0.0
    %999 = vmatpush1.msra.mxu0 0.0
    %1000 = vmatprep.subr.mxu0 0.0
    %1001 = vmatpush1.msra.mxu0 0.0
    %1002 = vmatprep.subr.mxu0 0.0
    %1003 = vmatpush1.msra.mxu0 0.0
    %1004 = vmatprep.subr.mxu0 0.0
    %1005 = vmatpush1.msra.mxu0 0.0
    %1006 = vmatprep.subr.mxu0 0.0
    %1007 = vmatpush1.msra.mxu0 0.0
    %1008 = vmatprep.subr.mxu0 0.0
    %1009 = vmatpush1.msra.mxu0 0.0
    %1010 = vmatprep.subr.mxu0 0.0
    %1011 = vmatpush1.msra.mxu0 0.0
    %1012 = vmatprep.subr.mxu0 0.0
    %1013 = vmatpush1.msra.mxu0 0.0
    %1014 = vmatprep.subr.mxu0 0.0
    %1015 = vmatpush1.msra.mxu0 0.0
    %1016 = vmatprep.subr.mxu0 0.0
    %1017 = vmatpush1.msra.mxu0 0.0
    %1018 = vmatprep.subr.mxu0 0.0
    %1019 = vmatpush1.msra.mxu0 0.0
    %1020 = vmatprep.subr.mxu0 0.0
    %1021 = vmatpush1.msra.mxu0 0.0
    %1022 = vmatprep.subr.mxu0 0.0
    %1023 = vmatpush1.msra.mxu0 0.0
    %1024 = vmatprep.subr.mxu0 0.0
    %1025 = vmatpush1.msra.mxu0 0.0
    %1026 = vmatprep.subr.mxu0 0.0
    %1027 = vmatpush1.msra.mxu0 0.0
    %1028 = vmatprep.subr.mxu0 0.0
    %1029 = vmatpush1.msra.mxu0 0.0
    %1030 = vmatprep.subr.mxu0 0.0
    %1031 = vmatpush1.msra.mxu0 0.0
    %1032 = vmatprep.subr.mxu0 0.0
    %1033 = vmatpush1.msra.mxu0 0.0
    %1034 = vmatprep.subr.mxu0 0.0
    %1035 = vmatpush1.msra.mxu0 0.0
    %1036 = vmatprep.subr.mxu0 0.0
    %1037 = vmatpush1.msra.mxu0 0.0
    %1038 = vmatprep.mubr.f32.mxu0 0.0
    %1039 = vmatmul.mubr.f32.gmra.mrb[0].mxu0 %v972
    %v1040 = vpop.f32.mrb[0].mxu0
    %v1041 = vadd.f32 %v62, %v1040
    %v1042 = vpop.f32.mrb[0].mxu0
    %1043 = vdwg.mxu0
    %1044 = vset.pattern.permute.xlu0 7
    %1045 = vperm.xlu0 %1044, %v26
    %v1046 = vpop.permute.xlu0 %1045
    %v1048 = vmul.f32 %v1046, %v47
    %v1049 = vadd.f32 %v1048, %v54
    %1050 = vmatprep.subr.mxu0 0.0
    %1051 = vmatpush1.msra.mxu0 %v29
    %1052 = vmatprep.subr.mxu0 0.0
    %1053 = vmatpush1.msra.mxu0 %v30
    %1054 = vmatprep.subr.mxu0 0.0
    %1055 = vmatpush1.msra.mxu0 %v31
    %1056 = vmatprep.subr.mxu0 0.0
    %1057 = vmatpush1.msra.mxu0 %v32
    %1058 = vmatprep.subr.mxu0 0.0
    %1059 = vmatpush1.msra.mxu0 0.0
    %1060 = vmatprep.subr.mxu0 0.0
    %1061 = vmatpush1.msra.mxu0 0.0
    %1062 = vmatprep.subr.mxu0 0.0
    %1063 = vmatpush1.msra.mxu0 0.0
    %1064 = vmatprep.subr.mxu0 0.0
    %1065 = vmatpush1.msra.mxu0 0.0
    %1066 = vmatprep.subr.mxu0 0.0
    %1067 = vmatpush1.msra.mxu0 0.0
    %1068 = vmatprep.subr.mxu0 0.0
    %1069 = vmatpush1.msra.mxu0 0.0
    %1070 = vmatprep.subr.mxu0 0.0
    %1071 = vmatpush1.msra.mxu0 0.0
    %1072 = vmatprep.subr.mxu0 0.0
    %1073 = vmatpush1.msra.mxu0 0.0
    %1074 = vmatprep.subr.mxu0 0.0
    %1075 = vmatpush1.msra.mxu0 0.0
    %1076 = vmatprep.subr.mxu0 0.0
    %1077 = vmatpush1.msra.mxu0 0.0
    %1078 = vmatprep.subr.mxu0 0.0
    %1079 = vmatpush1.msra.mxu0 0.0
    %1080 = vmatprep.subr.mxu0 0.0
    %1081 = vmatpush1.msra.mxu0 0.0
    %1082 = vmatprep.subr.mxu0 0.0
    %1083 = vmatpush1.msra.mxu0 0.0
    %1084 = vmatprep.subr.mxu0 0.0
    %1085 = vmatpush1.msra.mxu0 0.0
    %1086 = vmatprep.subr.mxu0 0.0
    %1087 = vmatpush1.msra.mxu0 0.0
    %1088 = vmatprep.subr.mxu0 0.0
    %1089 = vmatpush1.msra.mxu0 0.0
    %1090 = vmatprep.subr.mxu0 0.0
    %1091 = vmatpush1.msra.mxu0 0.0
    %1092 = vmatprep.subr.mxu0 0.0
    %1093 = vmatpush1.msra.mxu0 0.0
    %1094 = vmatprep.subr.mxu0 0.0
    %1095 = vmatpush1.msra.mxu0 0.0
    %1096 = vmatprep.subr.mxu0 0.0
    %1097 = vmatpush1.msra.mxu0 0.0
    %1098 = vmatprep.subr.mxu0 0.0
    %1099 = vmatpush1.msra.mxu0 0.0
    %1100 = vmatprep.subr.mxu0 0.0
    %1101 = vmatpush1.msra.mxu0 0.0
    %1102 = vmatprep.subr.mxu0 0.0
    %1103 = vmatpush1.msra.mxu0 0.0
    %1104 = vmatprep.subr.mxu0 0.0
    %1105 = vmatpush1.msra.mxu0 0.0
    %1106 = vmatprep.subr.mxu0 0.0
    %1107 = vmatpush1.msra.mxu0 0.0
    %1108 = vmatprep.subr.mxu0 0.0
    %1109 = vmatpush1.msra.mxu0 0.0
    %1110 = vmatprep.subr.mxu0 0.0
    %1111 = vmatpush1.msra.mxu0 0.0
    %1112 = vmatprep.subr.mxu0 0.0
    %1113 = vmatpush1.msra.mxu0 0.0
    %1114 = vmatprep.mubr.f32.mxu0 0.0
    %1115 = vmatmul.mubr.f32.gmra.mrb[0].mxu0 %v972
    %v1116 = vpop.f32.mrb[0].mxu0
    %v1117 = vadd.f32 0.0, %v1116
    %v1118 = vpop.f32.mrb[0].mxu0
    %1119 = vdwg.mxu0
    %v1120 = vadd.f32 %v1049, %v1117
    %v1121 = vtanh.pop %v1120
    %v1123 = vsel %vm64, %v1121, 0
    %1125 = vmatprep.subr.mxu0 0.0
    %1126 = vmatpush1.msra.mxu0 %v33
    %1127 = vmatprep.subr.mxu0 0.0
    %1128 = vmatpush1.msra.mxu0 %v34
    %1129 = vmatprep.subr.mxu0 0.0
    %1130 = vmatpush1.msra.mxu0 %v35
    %1131 = vmatprep.subr.mxu0 0.0
    %1132 = vmatpush1.msra.mxu0 %v36
    %1133 = vmatprep.subr.mxu0 0.0
    %1134 = vmatpush1.msra.mxu0 0.0
    %1135 = vmatprep.subr.mxu0 0.0
    %1136 = vmatpush1.msra.mxu0 0.0
    %1137 = vmatprep.subr.mxu0 0.0
    %1138 = vmatpush1.msra.mxu0 0.0
    %1139 = vmatprep.subr.mxu0 0.0
    %1140 = vmatpush1.msra.mxu0 0.0
    %1141 = vmatprep.subr.mxu0 0.0
    %1142 = vmatpush1.msra.mxu0 0.0
    %1143 = vmatprep.subr.mxu0 0.0
    %1144 = vmatpush1.msra.mxu0 0.0
    %1145 = vmatprep.subr.mxu0 0.0
    %1146 = vmatpush1.msra.mxu0 0.0
    %1147 = vmatprep.subr.mxu0 0.0
    %1148 = vmatpush1.msra.mxu0 0.0
    %1149 = vmatprep.subr.mxu0 0.0
    %1150 = vmatpush1.msra.mxu0 0.0
    %1151 = vmatprep.subr.mxu0 0.0
    %1152 = vmatpush1.msra.mxu0 0.0
    %1153 = vmatprep.subr.mxu0 0.0
    %1154 = vmatpush1.msra.mxu0 0.0
    %1155 = vmatprep.subr.mxu0 0.0
    %1156 = vmatpush1.msra.mxu0 0.0
    %1157 = vmatprep.subr.mxu0 0.0
    %1158 = vmatpush1.msra.mxu0 0.0
    %1159 = vmatprep.subr.mxu0 0.0
    %1160 = vmatpush1.msra.mxu0 0.0
    %1161 = vmatprep.subr.mxu0 0.0
    %1162 = vmatpush1.msra.mxu0 0.0
    %1163 = vmatprep.subr.mxu0 0.0
    %1164 = vmatpush1.msra.mxu0 0.0
    %1165 = vmatprep.subr.mxu0 0.0
    %1166 = vmatpush1.msra.mxu0 0.0
    %1167 = vmatprep.subr.mxu0 0.0
    %1168 = vmatpush1.msra.mxu0 0.0
    %1169 = vmatprep.subr.mxu0 0.0
    %1170 = vmatpush1.msra.mxu0 0.0
    %1171 = vmatprep.subr.mxu0 0.0
    %1172 = vmatpush1.msra.mxu0 0.0
    %1173 = vmatprep.subr.mxu0 0.0
    %1174 = vmatpush1.msra.mxu0 0.0
    %1175 = vmatprep.subr.mxu0 0.0
    %1176 = vmatpush1.msra.mxu0 0.0
    %1177 = vmatprep.subr.mxu0 0.0
    %1178 = vmatpush1.msra.mxu0 0.0
    %1179 = vmatprep.subr.mxu0 0.0
    %1180 = vmatpush1.msra.mxu0 0.0
    %1181 = vmatprep.subr.mxu0 0.0
    %1182 = vmatpush1.msra.mxu0 0.0
    %1183 = vmatprep.subr.mxu0 0.0
    %1184 = vmatpush1.msra.mxu0 0.0
    %1185 = vmatprep.subr.mxu0 0.0
    %1186 = vmatpush1.msra.mxu0 0.0
    %1187 = vmatprep.subr.mxu0 0.0
    %1188 = vmatpush1.msra.mxu0 0.0
    %1189 = vmatprep.mubr.f32.mxu0 0.0
    %1190 = vmatmul.mubr.f32.gmra.mrb[0].mxu0 %v1123
    %v1191 = vpop.f32.mrb[0].mxu0
    %v1192 = vadd.f32 %v62, %v1191
    %v1193 = vpop.f32.mrb[0].mxu0
    %1194 = vdwg.mxu0
    %1196 = vrot.lane.b32.xlu0 %v286, 1
    %v1197 = vpop.permute.xlu0 %1196
    %1200 = vrot.lane.b32.xlu0 %v437, 2
    %v1201 = vpop.permute.xlu0 %1200
    %1204 = vrot.lane.b32.xlu0 %v588, 3
    %v1205 = vpop.permute.xlu0 %1204
    %1208 = vrot.lane.b32.xlu0 %v739, 4
    %v1209 = vpop.permute.xlu0 %1208
    %1212 = vrot.lane.b32.xlu0 %v890, 5
    %v1213 = vpop.permute.xlu0 %1212
    %1216 = vrot.lane.b32.xlu0 %v1041, 6
    %v1217 = vpop.permute.xlu0 %1216
    %1220 = vrot.lane.b32.xlu0 %v1192, 7
    %v1221 = vpop.permute.xlu0 %1220
    %vm1223 = vcmask 7168
    %v1224 = vsel %vm1223, %v135, %v1197
    %vm1225 = vcmask 15360
    %v1226 = vsel %vm1225, %v1224, %v1201
    %vm1227 = vcmask 23552
    %v1228 = vsel %vm1227, %v1226, %v1205
    %vm1229 = vcmask 31744
    %v1230 = vsel %vm1229, %v1228, %v1209
    %vm1231 = vcmask 39936
    %v1232 = vsel %vm1231, %v1230, %v1213
    %vm1233 = vcmask 48128
    %v1234 = vsel %vm1233, %v1232, %v1217
    %vm1235 = vcmask 56320
    %v1236 = vsel %vm1235, %v1234, %v1221
    %vm1237 = vcmask 64512
    %1238 = vst.msk [vmem:[#allocation3] sm:$0xff] %vm1237, %v1236
    // Predicated region
    $region26: #{tpu_custom_call.1} parent=1 // pred_check
      _
    $region27: #{tpu_custom_call.1} parent=1 // pred_check_branch
      %1240 = sbr.rel (0) target = $region29
    $region28: #{tpu_custom_call.1} parent=1 // pred_region
      %s1242 = ssub.s32 128, 128
      %1243 = vsyncadd [#allocation4], %s1242
      %s1245 = sshll.u32 [#allocation3], 4
      %s1246 = int_to_ptr.vmem [resolvable:$true] %s1245
      %1248 = dma.vmem_to_hbm [thread:$0]  %s1246, 128, %s6, [#allocation4]
    $region29: #{tpu_custom_call.1} parent=1 // pred_fallthru
      _
    // Predicated region
    $region30: #{tpu_custom_call.1} parent=1 // pred_check
      _
    $region31: #{tpu_custom_call.1} parent=1 // pred_check_branch
      %1250 = sbr.rel (0) target = $region33
    $region32: #{tpu_custom_call.1} parent=1 // pred_region
      %1251 = dma.done [#allocation4], 128
    $region33: #{tpu_custom_call.1} parent=1 // pred_fallthru
      _
    %1252 = vsyncpa [#allocation4], 1

</llo_original>
